<compile_context>
chip_gen: v7x
topology: tpu7x:2x2x1
jax: 0.10.0
libtpu: 0.0.40
codegen_flags: <defaults>
</compile_context>

<pallas_src>
import math

import jax
import jax.numpy as jnp
from jax.experimental import pallas as pl
from jax.experimental.pallas import tpu as pltpu


def animation_kernel(x_ref, wx_ref, b1_ref, wo1_ref, bo1_ref,
                     w2b_ref, b2_ref, wo2_ref, bo2_ref,
                     out_ref):
    h1_width = b1_ref.shape[-1]                      # static (H1)

    x = x_ref[...]                                   # (TB, D_in) f32 (passthrough)
    xb = x.astype(wx_ref.dtype)                      # bf16 operand for the MXU

    # One fused MXU launch for both X-side matmuls:
    #   xz[:, :H1]  = X @ W_hidden1
    #   xz[:, H1:]  = X @ W_hidden2[:D_in]   (the X rows of hidden_2's weight)
    xz = jnp.dot(xb, wx_ref[...], preferred_element_type=jnp.float32)  # (TB, H1+H2)

    # h_1 = relu(hidden_1(X))
    h1 = jnp.maximum(xz[:, :h1_width] + b1_ref[...], 0.0)             # (TB, H1) f32
    x_to_h2 = xz[:, h1_width:]                                         # (TB, H2) f32

    # y_1 = softmax(out_1(h_1), dim=1)   (numerically stable, EXACT divide)
    z1 = jnp.dot(h1.astype(wo1_ref.dtype), wo1_ref[...],
                 preferred_element_type=jnp.float32) + bo1_ref[...]
    z1 = z1 - jnp.max(z1, axis=1, keepdims=True)
    e1 = jnp.exp(z1)
    y1 = e1 / jnp.sum(e1, axis=1, keepdims=True)                       # (TB, O1)

    # h_2 = relu(hidden_2(cat(X, y_1, dim=1)))  -- weight pre-split, no concat
    h2 = jnp.maximum(
        x_to_h2
        + jnp.dot(y1.astype(w2b_ref.dtype), w2b_ref[...],
                  preferred_element_type=jnp.float32)
        + b2_ref[...], 0.0)                                            # (TB, H2)

    # y_2 = sigmoid(out_2(h_2))
    z2 = jnp.dot(h2.astype(wo2_ref.dtype), wo2_ref[...],
                 preferred_element_type=jnp.float32) + bo2_ref[...]
    y2 = jax.nn.sigmoid(z2)                                            # (TB, O2)

    # Fused output = cat(y_1, y_2, X) -> one wide store instead of 2-3 narrow ones.
    out_ref[...] = jnp.concatenate([y1, y2, x], axis=1).astype(out_ref.dtype)


def _round_up(n, m):
    return ((n + m - 1) // m) * m


def animation_predictor(X, params, *, max_tile_b=16384):
    """Forward pass. Returns cat(y_1, y_2, X) of shape (B, o1 + o2 + d_in)."""
    (wx, b1, wo1, bo1, w2b, b2, wo2, bo2) = params
    B, d_in = X.shape
    o1 = wo1.shape[1]
    o2 = wo2.shape[1]
    d_out = o1 + o2 + d_in

    # Batch tiling:
    #  * tiny batches -> a single full-extent block (always layout-legal),
    #  * large batches -> big tiles (multiple of 8 sublanes) sized from B, but
    #    keeping >= 2 grid steps so the "parallel" axis can feed both
    #    TensorCores on v7x.  Footprint stays well under 32 MiB VMEM.
    if B <= 512:
        tile_b = B
    else:
        tile_b = min(max_tile_b, _round_up(pl.cdiv(B, 2), 8))
    grid = (pl.cdiv(B, tile_b),)

    weights = (wx, b1, wo1, bo1, w2b, b2, wo2, bo2)

    def resident(shape):
        # Same block every grid step -> weight stays VMEM-resident (no re-DMA).
        return pl.BlockSpec(shape, lambda i: (0, 0))

    out = pl.pallas_call(
        animation_kernel,
        out_shape=jax.ShapeDtypeStruct((B, d_out), jnp.float32),
        grid=grid,
        in_specs=[pl.BlockSpec((tile_b, d_in), lambda i: (i, 0))]
                 + [resident(w.shape) for w in weights],
        out_specs=pl.BlockSpec((tile_b, d_out), lambda i: (i, 0)),
        compiler_params=pltpu.CompilerParams(
            # Batch steps are independent -> shard across both TCs on v7x.
            dimension_semantics=("parallel",),
            # Explicit VMEM budget; actual double-buffered footprint is a few
            # MiB even at 16K-row tiles, safe on v7x's 64 MiB physical VMEM.
            vmem_limit_bytes=32 * 1024 * 1024),
    )(X, *weights)
    return out


def xavier_uniform(key, fan_in, fan_out, dtype=jnp.float32):
    # Matches torch.nn.init.xavier_uniform_ on a (fan_out, fan_in) Linear weight;
    # we store it as (fan_in, fan_out).
    a = math.sqrt(6.0 / (fan_in + fan_out))
    return jax.random.uniform(key, (fan_in, fan_out), dtype, minval=-a, maxval=a)


def init_params(key, input_size, hidden_sizes, out_sizes):
    k1, k2, k3, k4 = jax.random.split(key, 4)
    w1 = xavier_uniform(k1, input_size, hidden_sizes[0])
    b1 = jnp.full((1, hidden_sizes[0]), 0.01, jnp.float32)
    wo1 = xavier_uniform(k2, hidden_sizes[0], out_sizes[0])
    bo1 = jnp.full((1, out_sizes[0]), 0.01, jnp.float32)
    # hidden_2 acts on cat(X, y_1); split its weight once here.  The X-rows
    # (w2a) are fused with hidden_1's weight into a single (d_in, H1+H2)
    # matrix so the kernel issues one MXU launch for the whole X path.
    w2 = xavier_uniform(k3, input_size + out_sizes[0], hidden_sizes[1])
    w2a = w2[:input_size, :]          # rows acting on X
    w2b = w2[input_size:, :]          # rows acting on y_1
    b2 = jnp.full((1, hidden_sizes[1]), 0.01, jnp.float32)
    wo2 = xavier_uniform(k4, hidden_sizes[1], out_sizes[1])
    bo2 = jnp.full((1, out_sizes[1]), 0.01, jnp.float32)

    wx = jnp.concatenate([w1, w2a], axis=1)          # (d_in, H1 + H2)

    # Matmul weights in bf16 (MXU-native operands, half the weight DMA bytes);
    # biases stay f32 since all elementwise math is done in f32.
    bf = jnp.bfloat16
    return (wx.astype(bf), b1, wo1.astype(bf), bo1,
            w2b.astype(bf), b2, wo2.astype(bf), bo2)


def reference_forward(X, params, hidden_sizes):
    # Pure-JAX reference mirroring the PyTorch forward (unfused weights), with
    # the same bf16-operand / f32-accumulate matmul convention as the kernel.
    (wx, b1, wo1, bo1, w2b, b2, wo2, bo2) = params
    h1_w = hidden_sizes[0]
    w1 = wx[:, :h1_w]
    w2a = wx[:, h1_w:]
    w2 = jnp.concatenate([w2a, w2b], axis=0)         # hidden_2 weight on cat(X, y1)

    def dot(a, w):
        return jnp.dot(a.astype(w.dtype), w, preferred_element_type=jnp.float32)

    h1 = jax.nn.relu(dot(X, w1) + b1)
    y1 = jax.nn.softmax(dot(h1, wo1) + bo1, axis=1)
    h2 = jax.nn.relu(dot(jnp.concatenate([X, y1], axis=1), w2) + b2)
    y2 = jax.nn.sigmoid(dot(h2, wo2) + bo2)
    return jnp.concatenate([y1, y2, X], axis=1)


def _check(X, params, hidden_sizes, out_sizes):
    out = jax.block_until_ready(animation_predictor(X, params))
    ref = reference_forward(X, params, hidden_sizes)
    o1, o2 = out_sizes
    d_in = X.shape[1]
    assert out.shape == (X.shape[0], o1 + o2 + d_in)
    assert jnp.allclose(out, ref, atol=5e-3, rtol=5e-3)
    # Exact-divide softmax: rows sum to ~1; X passthrough slice is exact (f32).
    assert jnp.allclose(jnp.sum(out[:, :o1], axis=1), 1.0, atol=1e-3)
    assert jnp.allclose(out[:, o1 + o2:], X, atol=1e-6)
    return out


if __name__ == "__main__":
    # Small config consistent with the module (path vector -> animation vector).
    input_size = 8
    hidden_sizes = [32, 32]
    out_sizes = [16, 8]

    key = jax.random.PRNGKey(0)
    kx, kx2, kp = jax.random.split(key, 3)
    params = init_params(kp, input_size, hidden_sizes, out_sizes)

    # Small demo batch (single grid step, full-extent block).
    X_small = jax.random.normal(kx, (2, input_size), jnp.float32)
    _check(X_small, params, hidden_sizes, out_sizes)

    # Larger batch to exercise the batch-tiled, pipelined (and megacore-
    # parallel on v7x) grid path: tile_b=1024, grid=(2,).
    X_large = jax.random.normal(kx2, (2048, input_size), jnp.float32)
    _check(X_large, params, hidden_sizes, out_sizes)

    print("KERNEL_OK")
</pallas_src>

<mosaic_0001>
module attributes {stable_mosaic.version = 11 : i64} {
  func.func @animation_kernel(%arg0: i32, %arg1: memref<2x8xf32, #tpu.memory_space<vmem>>, %arg2: memref<8x64xbf16, #tpu.memory_space<vmem>>, %arg3: memref<1x32xf32, #tpu.memory_space<vmem>>, %arg4: memref<32x16xbf16, #tpu.memory_space<vmem>>, %arg5: memref<1x16xf32, #tpu.memory_space<vmem>>, %arg6: memref<16x32xbf16, #tpu.memory_space<vmem>>, %arg7: memref<1x32xf32, #tpu.memory_space<vmem>>, %arg8: memref<32x8xbf16, #tpu.memory_space<vmem>>, %arg9: memref<1x8xf32, #tpu.memory_space<vmem>>, %arg10: memref<2x32xf32, #tpu.memory_space<vmem>>) attributes {dimension_semantics = [#tpu.dimension_semantics<parallel>], iteration_bounds = array<i64: 1>, scalar_prefetch = 0 : i64, scratch_operands = 0 : i64, tpu.core_type = #tpu.core_type<tc>, window_params = [{transform_indices = @transform_0, window_bounds = array<i64: 2, 8>}, {pipeline_mode = #tpu.pipeline_mode<synchronous>, transform_indices = @transform_1, window_bounds = array<i64: 8, 64>}, {pipeline_mode = #tpu.pipeline_mode<synchronous>, transform_indices = @transform_2, window_bounds = array<i64: 1, 32>}, {pipeline_mode = #tpu.pipeline_mode<synchronous>, transform_indices = @transform_3, window_bounds = array<i64: 32, 16>}, {pipeline_mode = #tpu.pipeline_mode<synchronous>, transform_indices = @transform_4, window_bounds = array<i64: 1, 16>}, {pipeline_mode = #tpu.pipeline_mode<synchronous>, transform_indices = @transform_5, window_bounds = array<i64: 16, 32>}, {pipeline_mode = #tpu.pipeline_mode<synchronous>, transform_indices = @transform_6, window_bounds = array<i64: 1, 32>}, {pipeline_mode = #tpu.pipeline_mode<synchronous>, transform_indices = @transform_7, window_bounds = array<i64: 32, 8>}, {pipeline_mode = #tpu.pipeline_mode<synchronous>, transform_indices = @transform_8, window_bounds = array<i64: 1, 8>}, {transform_indices = @transform_9, window_bounds = array<i64: 2, 32>}]} {
    %c0 = arith.constant 0 : index
    %c0_0 = arith.constant 0 : index
    %0 = vector.load %arg1[%c0, %c0_0] : memref<2x8xf32, #tpu.memory_space<vmem>>, vector<2x8xf32>
    %1 = arith.truncf %0 : vector<2x8xf32> to vector<2x8xbf16>
    %c0_1 = arith.constant 0 : index
    %c0_2 = arith.constant 0 : index
    %2 = vector.load %arg2[%c0_1, %c0_2] : memref<8x64xbf16, #tpu.memory_space<vmem>>, vector<8x64xbf16>
    %cst = arith.constant dense<0.000000e+00> : vector<2x64xf32>
    %3 = tpu.matmul %1, %2, %cst {dimension_numbers = #tpu.dot_dimension_numbers<[1], [0], [0], [1], [0, 0, 1, 1], [], []>} : vector<2x8xbf16>, vector<8x64xbf16>, vector<2x64xf32> -> vector<2x64xf32>
    %4 = vector.extract_strided_slice %3 {offsets = [0, 0], sizes = [2, 32], strides = [1, 1]} : vector<2x64xf32> to vector<2x32xf32>
    %c0_3 = arith.constant 0 : index
    %c0_4 = arith.constant 0 : index
    %5 = vector.load %arg3[%c0_3, %c0_4] : memref<1x32xf32, #tpu.memory_space<vmem>>, vector<1x32xf32>
    %6 = vector.broadcast %5 : vector<1x32xf32> to vector<2x32xf32>
    %7 = arith.addf %4, %6 : vector<2x32xf32>
    %cst_5 = arith.constant 0.000000e+00 : f32
    %8 = vector.broadcast %cst_5 : f32 to vector<2x32xf32>
    %9 = arith.maximumf %7, %8 : vector<2x32xf32>
    %10 = vector.extract_strided_slice %3 {offsets = [0, 32], sizes = [2, 32], strides = [1, 1]} : vector<2x64xf32> to vector<2x32xf32>
    %11 = arith.truncf %9 : vector<2x32xf32> to vector<2x32xbf16>
    %c0_6 = arith.constant 0 : index
    %c0_7 = arith.constant 0 : index
    %12 = vector.load %arg4[%c0_6, %c0_7] : memref<32x16xbf16, #tpu.memory_space<vmem>>, vector<32x16xbf16>
    %cst_8 = arith.constant dense<0.000000e+00> : vector<2x16xf32>
    %13 = tpu.matmul %11, %12, %cst_8 {dimension_numbers = #tpu.dot_dimension_numbers<[1], [0], [0], [1], [0, 0, 1, 1], [], []>} : vector<2x32xbf16>, vector<32x16xbf16>, vector<2x16xf32> -> vector<2x16xf32>
    %c0_9 = arith.constant 0 : index
    %c0_10 = arith.constant 0 : index
    %14 = vector.load %arg5[%c0_9, %c0_10] : memref<1x16xf32, #tpu.memory_space<vmem>>, vector<1x16xf32>
    %15 = vector.broadcast %14 : vector<1x16xf32> to vector<2x16xf32>
    %16 = arith.addf %13, %15 : vector<2x16xf32>
    %cst_11 = arith.constant dense<0xFF800000> : vector<2xf32>
    %17 = vector.multi_reduction <maximumf>, %16, %cst_11 [1] : vector<2x16xf32> to vector<2xf32>
    %18 = vector.shape_cast %17 : vector<2xf32> to vector<2x1xf32>
    %19 = vector.broadcast %18 : vector<2x1xf32> to vector<2x16xf32>
    %20 = arith.subf %16, %19 : vector<2x16xf32>
    %21 = math.exp %20 : vector<2x16xf32>
    %cst_12 = arith.constant dense<0.000000e+00> : vector<2xf32>
    %22 = vector.multi_reduction <add>, %21, %cst_12 [1] : vector<2x16xf32> to vector<2xf32>
    %23 = vector.shape_cast %22 : vector<2xf32> to vector<2x1xf32>
    %24 = vector.broadcast %23 : vector<2x1xf32> to vector<2x16xf32>
    %25 = arith.divf %21, %24 : vector<2x16xf32>
    %26 = arith.truncf %25 : vector<2x16xf32> to vector<2x16xbf16>
    %c0_13 = arith.constant 0 : index
    %c0_14 = arith.constant 0 : index
    %27 = vector.load %arg6[%c0_13, %c0_14] : memref<16x32xbf16, #tpu.memory_space<vmem>>, vector<16x32xbf16>
    %cst_15 = arith.constant dense<0.000000e+00> : vector<2x32xf32>
    %28 = tpu.matmul %26, %27, %cst_15 {dimension_numbers = #tpu.dot_dimension_numbers<[1], [0], [0], [1], [0, 0, 1, 1], [], []>} : vector<2x16xbf16>, vector<16x32xbf16>, vector<2x32xf32> -> vector<2x32xf32>
    %29 = arith.addf %10, %28 : vector<2x32xf32>
    %c0_16 = arith.constant 0 : index
    %c0_17 = arith.constant 0 : index
    %30 = vector.load %arg7[%c0_16, %c0_17] : memref<1x32xf32, #tpu.memory_space<vmem>>, vector<1x32xf32>
    %31 = vector.broadcast %30 : vector<1x32xf32> to vector<2x32xf32>
    %32 = arith.addf %29, %31 : vector<2x32xf32>
    %cst_18 = arith.constant 0.000000e+00 : f32
    %33 = vector.broadcast %cst_18 : f32 to vector<2x32xf32>
    %34 = arith.maximumf %32, %33 : vector<2x32xf32>
    %35 = arith.truncf %34 : vector<2x32xf32> to vector<2x32xbf16>
    %c0_19 = arith.constant 0 : index
    %c0_20 = arith.constant 0 : index
    %36 = vector.load %arg8[%c0_19, %c0_20] : memref<32x8xbf16, #tpu.memory_space<vmem>>, vector<32x8xbf16>
    %cst_21 = arith.constant dense<0.000000e+00> : vector<2x8xf32>
    %37 = tpu.matmul %35, %36, %cst_21 {dimension_numbers = #tpu.dot_dimension_numbers<[1], [0], [0], [1], [0, 0, 1, 1], [], []>} : vector<2x32xbf16>, vector<32x8xbf16>, vector<2x8xf32> -> vector<2x8xf32>
    %c0_22 = arith.constant 0 : index
    %c0_23 = arith.constant 0 : index
    %38 = vector.load %arg9[%c0_22, %c0_23] : memref<1x8xf32, #tpu.memory_space<vmem>>, vector<1x8xf32>
    %39 = vector.broadcast %38 : vector<1x8xf32> to vector<2x8xf32>
    %40 = arith.addf %37, %39 : vector<2x8xf32>
    %41 = arith.negf %40 : vector<2x8xf32>
    %42 = math.exp %41 : vector<2x8xf32>
    %cst_24 = arith.constant 1.000000e+00 : f32
    %43 = vector.broadcast %cst_24 : f32 to vector<2x8xf32>
    %44 = arith.addf %43, %42 : vector<2x8xf32>
    %45 = arith.divf %43, %44 : vector<2x8xf32>
    %46 = tpu.concatenate %25, %45, %0 in 1 : vector<2x16xf32>, vector<2x8xf32>, vector<2x8xf32> -> vector<2x32xf32>
    %c0_25 = arith.constant 0 : index
    %c0_26 = arith.constant 0 : index
    %47 = vector.load %arg10[%c0_25, %c0_26] : memref<2x32xf32, #tpu.memory_space<vmem>>, vector<2x32xf32>
    tpu.vector_store %arg10[%c0_25, %c0_26], %46 {strides = array<i32>} : memref<2x32xf32, #tpu.memory_space<vmem>>, vector<2x32xf32>,
    return
  }
  func.func @transform_0(%arg0: i32) -> (i32, i32) {
    %c0_i32 = arith.constant 0 : i32
    %c0_i32_0 = arith.constant 0 : i32
    return %arg0, %c0_i32 : i32, i32
  }
  func.func @transform_1(%arg0: i32) -> (i32, i32) {
    %c0_i32 = arith.constant 0 : i32
    %c0_i32_0 = arith.constant 0 : i32
    %c0_i32_1 = arith.constant 0 : i32
    return %c0_i32, %c0_i32_0 : i32, i32
  }
  func.func @transform_2(%arg0: i32) -> (i32, i32) {
    %c0_i32 = arith.constant 0 : i32
    %c0_i32_0 = arith.constant 0 : i32
    %c0_i32_1 = arith.constant 0 : i32
    return %c0_i32, %c0_i32_0 : i32, i32
  }
  func.func @transform_3(%arg0: i32) -> (i32, i32) {
    %c0_i32 = arith.constant 0 : i32
    %c0_i32_0 = arith.constant 0 : i32
    %c0_i32_1 = arith.constant 0 : i32
    return %c0_i32, %c0_i32_0 : i32, i32
  }
  func.func @transform_4(%arg0: i32) -> (i32, i32) {
    %c0_i32 = arith.constant 0 : i32
    %c0_i32_0 = arith.constant 0 : i32
    %c0_i32_1 = arith.constant 0 : i32
    return %c0_i32, %c0_i32_0 : i32, i32
  }
  func.func @transform_5(%arg0: i32) -> (i32, i32) {
    %c0_i32 = arith.constant 0 : i32
    %c0_i32_0 = arith.constant 0 : i32
    %c0_i32_1 = arith.constant 0 : i32
    return %c0_i32, %c0_i32_0 : i32, i32
  }
  func.func @transform_6(%arg0: i32) -> (i32, i32) {
    %c0_i32 = arith.constant 0 : i32
    %c0_i32_0 = arith.constant 0 : i32
    %c0_i32_1 = arith.constant 0 : i32
    return %c0_i32, %c0_i32_0 : i32, i32
  }
  func.func @transform_7(%arg0: i32) -> (i32, i32) {
    %c0_i32 = arith.constant 0 : i32
    %c0_i32_0 = arith.constant 0 : i32
    %c0_i32_1 = arith.constant 0 : i32
    return %c0_i32, %c0_i32_0 : i32, i32
  }
  func.func @transform_8(%arg0: i32) -> (i32, i32) {
    %c0_i32 = arith.constant 0 : i32
    %c0_i32_0 = arith.constant 0 : i32
    %c0_i32_1 = arith.constant 0 : i32
    return %c0_i32, %c0_i32_0 : i32, i32
  }
  func.func @transform_9(%arg0: i32) -> (i32, i32) {
    %c0_i32 = arith.constant 0 : i32
    %c0_i32_0 = arith.constant 0 : i32
    return %arg0, %c0_i32 : i32, i32
  }
}

</mosaic_0001>

<llo_original>
// kernel: tpu_custom_call.1
$region0: #{tpu_custom_call.1}
  #allocation0 [shape = 'u32[]', space=smem, size = 0x4, offset = 0x4, fixed_abs, tag = 'smem constant byte address 0x4 - core index']
  #allocation1 [shape = 'u32[144,128]{1,0:T(1,128)}', space=vmem, size = 0x12000, scoped, tag = 'internal scratch']
  %s0 = inlined_call_operand.vmem [shape: f32[2,8], index: 0, kind: input, shape index: {}]
  %s1 = inlined_call_operand.vmem [shape: bf16[8,64], index: 1, kind: input, shape index: {}]
  %s2 = inlined_call_operand.vmem [shape: f32[1,32], index: 2, kind: input, shape index: {}]
  %s3 = inlined_call_operand.vmem [shape: bf16[32,16], index: 3, kind: input, shape index: {}]
  %s4 = inlined_call_operand.vmem [shape: f32[1,16], index: 4, kind: input, shape index: {}]
  %s5 = inlined_call_operand.vmem [shape: bf16[16,32], index: 5, kind: input, shape index: {}]
  %s6 = inlined_call_operand.vmem [shape: f32[1,32], index: 6, kind: input, shape index: {}]
  %s7 = inlined_call_operand.vmem [shape: bf16[32,8], index: 7, kind: input, shape index: {}]
  %s8 = inlined_call_operand.vmem [shape: f32[1,8], index: 8, kind: input, shape index: {}]
  %s9 = inlined_call_operand.hbm [shape: f32[2,32], index: 9, kind: output, shape index: {}]
  %s10 = sld [smem:[#allocation0]]
  $region46: #{tpu_custom_call.1} parent=0
    _
  %s12 = ssub.s32 1, %s10
  %s13 = scalar_select 0, %s12, %s10
  $region1: #{tpu_custom_call.1} parent=0
    #allocation2 [shape = 'u8[1024]{0}', space=vmem, size = 0x400, scoped, tag = 'output window, operand 0, single buffered']
    #allocation3 [shape = 's32[1]{0}', space=sflag, size = 0x4, scoped, tag = 'scoped memory for tpu_custom_call.1']
    %14 = vsyncpa [#allocation3], 0
    // Predicated region
    $region2: #{tpu_custom_call.1} parent=1 // pred_check
      _
    $region3: #{tpu_custom_call.1} parent=1 // pred_check_branch
      %16 = sbr.rel (0) target = $region5
    $region4: #{tpu_custom_call.1} parent=1 // pred_region
      _
    $region5: #{tpu_custom_call.1} parent=1 // pred_fallthru
      _
    // Predicated region
    $region6: #{tpu_custom_call.1} parent=1 // pred_check
      _
    $region7: #{tpu_custom_call.1} parent=1 // pred_check_branch
      %18 = sbr.rel (0) target = $region9
    $region8: #{tpu_custom_call.1} parent=1 // pred_region
      _
    $region9: #{tpu_custom_call.1} parent=1 // pred_fallthru
      _
    // Predicated region
    $region10: #{tpu_custom_call.1} parent=1 // pred_check
      _
    $region11: #{tpu_custom_call.1} parent=1 // pred_check_branch
      %20 = sbr.rel (0) target = $region13
    $region12: #{tpu_custom_call.1} parent=1 // pred_region
      _
    $region13: #{tpu_custom_call.1} parent=1 // pred_fallthru
      _
    // Predicated region
    $region14: #{tpu_custom_call.1} parent=1 // pred_check
      _
    $region15: #{tpu_custom_call.1} parent=1 // pred_check_branch
      %22 = sbr.rel (0) target = $region17
    $region16: #{tpu_custom_call.1} parent=1 // pred_region
      _
    $region17: #{tpu_custom_call.1} parent=1 // pred_fallthru
      _
    // Predicated region
    $region18: #{tpu_custom_call.1} parent=1 // pred_check
      _
    $region19: #{tpu_custom_call.1} parent=1 // pred_check_branch
      %24 = sbr.rel (0) target = $region21
    $region20: #{tpu_custom_call.1} parent=1 // pred_region
      _
    $region21: #{tpu_custom_call.1} parent=1 // pred_fallthru
      _
    // Predicated region
    $region22: #{tpu_custom_call.1} parent=1 // pred_check
      _
    $region23: #{tpu_custom_call.1} parent=1 // pred_check_branch
      %26 = sbr.rel (0) target = $region25
    $region24: #{tpu_custom_call.1} parent=1 // pred_region
      _
    $region25: #{tpu_custom_call.1} parent=1 // pred_fallthru
      _
    // Predicated region
    $region26: #{tpu_custom_call.1} parent=1 // pred_check
      _
    $region27: #{tpu_custom_call.1} parent=1 // pred_check_branch
      %28 = sbr.rel (0) target = $region29
    $region28: #{tpu_custom_call.1} parent=1 // pred_region
      _
    $region29: #{tpu_custom_call.1} parent=1 // pred_fallthru
      _
    // Predicated region
    $region30: #{tpu_custom_call.1} parent=1 // pred_check
      _
    $region31: #{tpu_custom_call.1} parent=1 // pred_check_branch
      %30 = sbr.rel (0) target = $region33
    $region32: #{tpu_custom_call.1} parent=1 // pred_region
      _
    $region33: #{tpu_custom_call.1} parent=1 // pred_fallthru
      _
    // Predicated region
    $region34: #{tpu_custom_call.1} parent=1 // pred_check
      _
    $region35: #{tpu_custom_call.1} parent=1 // pred_check_branch
      %32 = sbr.rel (0) target = $region37
    $region36: #{tpu_custom_call.1} parent=1 // pred_region
      _
    $region37: #{tpu_custom_call.1} parent=1 // pred_fallthru
      _
    %v34 = vld [vmem:[%s0] sm:$0x3]
    %v35 = vpack.c.bf16 %v34, %v34
    %v36 = vld [vmem:[%s1] sm:$0xf]
    %vm37 = vcmask 64512
    %v39 = vsel %vm37, %v35, 0
    %vm41 = vcmask 1043456
    %v43 = vsel %vm41, %v36, 0
    %45 = vmatprep.subr.bf16.mxu0 0
    %46 = vmatpush1.bf16.msra.mxu0 %v43
    %47 = vmatprep.subr.bf16.mxu0 0
    %48 = vmatpush1.bf16.msra.mxu0 0
    %49 = vmatprep.subr.bf16.mxu0 0
    %50 = vmatpush1.bf16.msra.mxu0 0
    %51 = vmatprep.subr.bf16.mxu0 0
    %52 = vmatpush1.bf16.msra.mxu0 0
    %53 = vmatprep.subr.bf16.mxu0 0
    %54 = vmatpush1.bf16.msra.mxu0 0
    %55 = vmatprep.subr.bf16.mxu0 0
    %56 = vmatpush1.bf16.msra.mxu0 0
    %57 = vmatprep.subr.bf16.mxu0 0
    %58 = vmatpush1.bf16.msra.mxu0 0
    %59 = vmatprep.subr.bf16.mxu0 0
    %60 = vmatpush1.bf16.msra.mxu0 0
    %61 = vmatprep.subr.bf16.mxu0 0
    %62 = vmatpush1.bf16.msra.mxu0 0
    %63 = vmatprep.subr.bf16.mxu0 0
    %64 = vmatpush1.bf16.msra.mxu0 0
    %65 = vmatprep.subr.bf16.mxu0 0
    %66 = vmatpush1.bf16.msra.mxu0 0
    %67 = vmatprep.subr.bf16.mxu0 0
    %68 = vmatpush1.bf16.msra.mxu0 0
    %69 = vmatprep.subr.bf16.mxu0 0
    %70 = vmatpush1.bf16.msra.mxu0 0
    %71 = vmatprep.subr.bf16.mxu0 0
    %72 = vmatpush1.bf16.msra.mxu0 0
    %73 = vmatprep.subr.bf16.mxu0 0
    %74 = vmatpush1.bf16.msra.mxu0 0
    %75 = vmatprep.subr.bf16.mxu0 0
    %76 = vmatpush1.bf16.msra.mxu0 0
    %77 = vmatprep.mubr.bf16.mxu0 0
    %78 = vmatmul.mubr.bf16.gmra.mrb[0].mxu0 %v39
    %v79 = vpop.f32.mrb[0].mxu0
    %v80 = vadd.f32 0.0, %v79
    %v81 = vpop.f32.mrb[0].mxu0
    %v82 = vpop.f32.mrb[0].mxu0
    %v83 = vpop.f32.mrb[0].mxu0
    %84 = vdwg.mxu0
    %v85 = vld [vmem:[%s2] sm:$0x1]
    %v87 = vlaneseq
    %v88 = vshrl.u32 %v87, 7
    %v89 = vsub.s32 0, %v88
    %v90 = vrot.slane %v85, %v89
    %v92 = vadd.f32 %v80, %v90
    %v93 = vmax.f32 %v92, 0.0
    %v94 = vpack.c.bf16 %v93, %v93
    %v95 = vld [vmem:[%s3] sm:$0xf]
    %v96 = vld [vmem:[%s3 + $0x4] sm:$0xf]
    %v97 = vld [vmem:[%s3 + $0x8] sm:$0xf]
    %v98 = vld [vmem:[%s3 + $0xc] sm:$0xf]
    %v99 = vld [vmem:[%s4] sm:$0x1]
    %v101 = vlaneseq
    %v102 = vshrl.u32 %v101, 7
    %v103 = vsub.s32 0, %v102
    %v104 = vrot.slane %v99, %v103
    %v110 = vunpack.c.l.b16 %v95
    %v111 = vunpack.c.l.b16 %v96
    %v112 = vunpack.c.l.b16 %v97
    %v113 = vunpack.c.l.b16 %v98
    %v114 = vpack.c.b16 %v111, %v110
    %v115 = vpack.c.b16 %v113, %v112
    %vm118 = vcmask 261120
    %v120 = vsel %vm118, %v94, 0
    %122 = vmatprep.subr.bf16.mxu0 0
    %123 = vmatpush1.bf16.msra.mxu0 %v114
    %124 = vmatprep.subr.bf16.mxu0 0
    %125 = vmatpush1.bf16.msra.mxu0 %v115
    %126 = vmatprep.subr.bf16.mxu0 0
    %127 = vmatpush1.bf16.msra.mxu0 0
    %128 = vmatprep.subr.bf16.mxu0 0
    %129 = vmatpush1.bf16.msra.mxu0 0
    %130 = vmatprep.subr.bf16.mxu0 0
    %131 = vmatpush1.bf16.msra.mxu0 0
    %132 = vmatprep.subr.bf16.mxu0 0
    %133 = vmatpush1.bf16.msra.mxu0 0
    %134 = vmatprep.subr.bf16.mxu0 0
    %135 = vmatpush1.bf16.msra.mxu0 0
    %136 = vmatprep.subr.bf16.mxu0 0
    %137 = vmatpush1.bf16.msra.mxu0 0
    %138 = vmatprep.subr.bf16.mxu0 0
    %139 = vmatpush1.bf16.msra.mxu0 0
    %140 = vmatprep.subr.bf16.mxu0 0
    %141 = vmatpush1.bf16.msra.mxu0 0
    %142 = vmatprep.subr.bf16.mxu0 0
    %143 = vmatpush1.bf16.msra.mxu0 0
    %144 = vmatprep.subr.bf16.mxu0 0
    %145 = vmatpush1.bf16.msra.mxu0 0
    %146 = vmatprep.subr.bf16.mxu0 0
    %147 = vmatpush1.bf16.msra.mxu0 0
    %148 = vmatprep.subr.bf16.mxu0 0
    %149 = vmatpush1.bf16.msra.mxu0 0
    %150 = vmatprep.subr.bf16.mxu0 0
    %151 = vmatpush1.bf16.msra.mxu0 0
    %152 = vmatprep.subr.bf16.mxu0 0
    %153 = vmatpush1.bf16.msra.mxu0 0
    %154 = vmatprep.mubr.bf16.mxu0 0
    %155 = vmatmul.mubr.bf16.gmra.mrb[0].mxu0 %v120
    %v156 = vpop.f32.mrb[0].mxu0
    %v157 = vadd.f32 %v104, %v156
    %v158 = vpop.f32.mrb[0].mxu0
    %v159 = vpop.f32.mrb[0].mxu0
    %v160 = vpop.f32.mrb[0].mxu0
    %161 = vdwg.mxu0
    %vm162 = vcmask 123904
    %v163 = vsel %vm162, %v157, -inf
    %164 = vmax.xlane.f32.xlu0 %v163
    %v165 = vpop.xlane.xlu0 %164
    %v166 = vsub.f32 %v157, %v165
    %v167 = vmul.f32 %v166, 1.442695
    %v168 = vpow.pop %v167
    %v169 = vsel %vm162, %v168, 0.0
    %170 = vadd.xlane.f32.xlu0 %v169
    %v171 = vpop.xlane.xlu0 %170
    %v172 = vrcp.pop %v171
    %v173 = vmul.f32 %v168, %v172
    %v174 = vpack.c.bf16 %v173, %v173
    %v175 = vld [vmem:[%s5] sm:$0xf]
    %v176 = vld [vmem:[%s5 + $0x4] sm:$0xf]
    %v179 = vunpack.c.l.b16 %v175
    %v180 = vunpack.c.l.b16 %v176
    %v181 = vpack.c.b16 %v180, %v179
    %vm183 = vcmask 130048
    %v185 = vsel %vm183, %v174, 0
    %187 = vmatprep.subr.bf16.mxu0 0
    %188 = vmatpush1.bf16.msra.mxu0 %v181
    %189 = vmatprep.subr.bf16.mxu0 0
    %190 = vmatpush1.bf16.msra.mxu0 0
    %191 = vmatprep.subr.bf16.mxu0 0
    %192 = vmatpush1.bf16.msra.mxu0 0
    %193 = vmatprep.subr.bf16.mxu0 0
    %194 = vmatpush1.bf16.msra.mxu0 0
    %195 = vmatprep.subr.bf16.mxu0 0
    %196 = vmatpush1.bf16.msra.mxu0 0
    %197 = vmatprep.subr.bf16.mxu0 0
    %198 = vmatpush1.bf16.msra.mxu0 0
    %199 = vmatprep.subr.bf16.mxu0 0
    %200 = vmatpush1.bf16.msra.mxu0 0
    %201 = vmatprep.subr.bf16.mxu0 0
    %202 = vmatpush1.bf16.msra.mxu0 0
    %203 = vmatprep.subr.bf16.mxu0 0
    %204 = vmatpush1.bf16.msra.mxu0 0
    %205 = vmatprep.subr.bf16.mxu0 0
    %206 = vmatpush1.bf16.msra.mxu0 0
    %207 = vmatprep.subr.bf16.mxu0 0
    %208 = vmatpush1.bf16.msra.mxu0 0
    %209 = vmatprep.subr.bf16.mxu0 0
    %210 = vmatpush1.bf16.msra.mxu0 0
    %211 = vmatprep.subr.bf16.mxu0 0
    %212 = vmatpush1.bf16.msra.mxu0 0
    %213 = vmatprep.subr.bf16.mxu0 0
    %214 = vmatpush1.bf16.msra.mxu0 0
    %215 = vmatprep.subr.bf16.mxu0 0
    %216 = vmatpush1.bf16.msra.mxu0 0
    %217 = vmatprep.subr.bf16.mxu0 0
    %218 = vmatpush1.bf16.msra.mxu0 0
    %219 = vmatprep.mubr.bf16.mxu0 0
    %220 = vmatmul.mubr.bf16.gmra.mrb[0].mxu0 %v185
    %v221 = vpop.f32.mrb[0].mxu0
    %v222 = vadd.f32 0.0, %v221
    %v223 = vpop.f32.mrb[0].mxu0
    %v224 = vpop.f32.mrb[0].mxu0
    %v225 = vpop.f32.mrb[0].mxu0
    %226 = vdwg.mxu0
    %228 = vrot.lane.b32.xlu0 %v222, 32
    %v229 = vpop.permute.xlu0 %228
    %v231 = vadd.f32 %v80, %v229
    %v232 = vld [vmem:[%s6] sm:$0x1]
    %v234 = vlaneseq
    %v235 = vshrl.u32 %v234, 7
    %v236 = vsub.s32 0, %v235
    %v237 = vrot.slane %v232, %v236
    %238 = vrot.lane.b32.xlu0 %v237, 32
    %v239 = vpop.permute.xlu0 %238
    %v241 = vadd.f32 %v231, %v239
    %v242 = vmax.f32 %v241, 0.0
    %v243 = vpack.c.bf16 %v242, %v242
    %v244 = vld [vmem:[%s7] sm:$0xf]
    %v245 = vld [vmem:[%s7 + $0x4] sm:$0xf]
    %v246 = vld [vmem:[%s7 + $0x8] sm:$0xf]
    %v247 = vld [vmem:[%s7 + $0xc] sm:$0xf]
    %v248 = vld [vmem:[%s8] sm:$0x1]
    %v250 = vlaneseq
    %v251 = vshrl.u32 %v250, 7
    %v252 = vsub.s32 0, %v251
    %v253 = vrot.slane %v248, %v252
    %256 = vrot.lane.b32.xlu0 %v243, 96
    %v257 = vpop.permute.xlu0 %256
    %v262 = vunpack.c.l.b16 %v244
    %v263 = vunpack.c.l.b16 %v245
    %v264 = vunpack.c.l.b16 %v246
    %v265 = vunpack.c.l.b16 %v247
    %v266 = vpack.c.b16 %v263, %v262
    %v267 = vpack.c.b16 %v265, %v264
    %v271 = vsel %vm118, %v257, 0
    %273 = vmatprep.subr.bf16.mxu0 0
    %274 = vmatpush1.bf16.msra.mxu0 %v266
    %275 = vmatprep.subr.bf16.mxu0 0
    %276 = vmatpush1.bf16.msra.mxu0 %v267
    %277 = vmatprep.subr.bf16.mxu0 0
    %278 = vmatpush1.bf16.msra.mxu0 0
    %279 = vmatprep.subr.bf16.mxu0 0
    %280 = vmatpush1.bf16.msra.mxu0 0
    %281 = vmatprep.subr.bf16.mxu0 0
    %282 = vmatpush1.bf16.msra.mxu0 0
    %283 = vmatprep.subr.bf16.mxu0 0
    %284 = vmatpush1.bf16.msra.mxu0 0
    %285 = vmatprep.subr.bf16.mxu0 0
    %286 = vmatpush1.bf16.msra.mxu0 0
    %287 = vmatprep.subr.bf16.mxu0 0
    %288 = vmatpush1.bf16.msra.mxu0 0
    %289 = vmatprep.subr.bf16.mxu0 0
    %290 = vmatpush1.bf16.msra.mxu0 0
    %291 = vmatprep.subr.bf16.mxu0 0
    %292 = vmatpush1.bf16.msra.mxu0 0
    %293 = vmatprep.subr.bf16.mxu0 0
    %294 = vmatpush1.bf16.msra.mxu0 0
    %295 = vmatprep.subr.bf16.mxu0 0
    %296 = vmatpush1.bf16.msra.mxu0 0
    %297 = vmatprep.subr.bf16.mxu0 0
    %298 = vmatpush1.bf16.msra.mxu0 0
    %299 = vmatprep.subr.bf16.mxu0 0
    %300 = vmatpush1.bf16.msra.mxu0 0
    %301 = vmatprep.subr.bf16.mxu0 0
    %302 = vmatpush1.bf16.msra.mxu0 0
    %303 = vmatprep.subr.bf16.mxu0 0
    %304 = vmatpush1.bf16.msra.mxu0 0
    %305 = vmatprep.mubr.bf16.mxu0 0
    %306 = vmatmul.mubr.bf16.gmra.mrb[0].mxu0 %v271
    %v307 = vpop.f32.mrb[0].mxu0
    %v308 = vadd.f32 %v253, %v307
    %v309 = vpop.f32.mrb[0].mxu0
    %v310 = vpop.f32.mrb[0].mxu0
    %v311 = vpop.f32.mrb[0].mxu0
    %312 = vdwg.mxu0
    %v313 = vxor.u32 %v308, 2147483648
    %v314 = vmul.f32 %v313, 1.442695
    %v315 = vpow.pop %v314
    %v316 = vadd.f32 %v315, 1.0
    %v317 = vrcp.pop %v316
    %v318 = vmul.f32 1.0, %v317
    %320 = vrot.lane.b32.xlu0 %v318, 16
    %v321 = vpop.permute.xlu0 %320
    %324 = vrot.lane.b32.xlu0 %v34, 24
    %v325 = vpop.permute.xlu0 %324
    %v327 = vsel %vm183, %v173, %v321
    %vm328 = vcmask 195584
    %v329 = vsel %vm328, %v327, %v325
    %vm330 = vcmask 254976
    %331 = vst.msk [vmem:[#allocation2] sm:$0x3] %vm330, %v329
    // Predicated region
    $region38: #{tpu_custom_call.1} parent=1 // pred_check
      _
    $region39: #{tpu_custom_call.1} parent=1 // pred_check_branch
      %333 = sbr.rel (0) target = $region41
    $region40: #{tpu_custom_call.1} parent=1 // pred_region
      %s335 = ssub.s32 32, 32
      %336 = vsyncadd [#allocation3], %s335
      %s338 = sshll.u32 [#allocation2], 4
      %s339 = int_to_ptr.vmem [resolvable:$true] %s338
      %341 = dma.vmem_to_hbm [thread:$0]  %s339, 32, %s9, [#allocation3]
    $region41: #{tpu_custom_call.1} parent=1 // pred_fallthru
      _
    // Predicated region
    $region42: #{tpu_custom_call.1} parent=1 // pred_check
      _
    $region43: #{tpu_custom_call.1} parent=1 // pred_check_branch
      %343 = sbr.rel (0) target = $region45
    $region44: #{tpu_custom_call.1} parent=1 // pred_region
      %344 = dma.done [#allocation3], 32
    $region45: #{tpu_custom_call.1} parent=1 // pred_fallthru
      _
    %345 = vsyncpa [#allocation3], 1

</llo_original>
